<compile_context>
chip_gen: v5e
topology: v5e:2x2
jax: 0.10.0
libtpu: 0.0.40
codegen_flags: <defaults>
</compile_context>

<pallas_src>
import math
import numpy as np
import jax
import jax.numpy as jnp
from jax import lax
from jax.experimental import pallas as pl
from jax.experimental.pallas import tpu as pltpu


def _round_up(x, m):
    return ((x + m - 1) // m) * m


# ---------------------------------------------------------------------------
# Pallas kernels: tiled GEMM with f32 accumulator (bias / no-bias variants)
# ---------------------------------------------------------------------------
def _bilinear_kernel_bias(x_ref, w_ref, b_ref, o_ref, acc_ref):
    # x_ref: (bm, tk)   w_ref: (tn, tk)   b_ref: (1, tn)   o_ref: (bm, tn)
    k = pl.program_id(2)

    @pl.when(k == 0)
    def _():
        acc_ref[...] = jnp.zeros_like(acc_ref)

    # Contract trailing dims of both operands -> MXU, no in-kernel transpose.
    acc_ref[...] += lax.dot_general(
        x_ref[...], w_ref[...],
        dimension_numbers=(((1,), (1,)), ((), ())),
        preferred_element_type=jnp.float32)

    @pl.when(k == pl.num_programs(2) - 1)
    def _():
        o_ref[...] = (acc_ref[...] + b_ref[...]).astype(o_ref.dtype)


def _bilinear_kernel_nobias(x_ref, w_ref, o_ref, acc_ref):
    k = pl.program_id(2)

    @pl.when(k == 0)
    def _():
        acc_ref[...] = jnp.zeros_like(acc_ref)

    acc_ref[...] += lax.dot_general(
        x_ref[...], w_ref[...],
        dimension_numbers=(((1,), (1,)), ((), ())),
        preferred_element_type=jnp.float32)

    @pl.when(k == pl.num_programs(2) - 1)
    def _():
        o_ref[...] = acc_ref[...].astype(o_ref.dtype)


# ---------------------------------------------------------------------------
# Wrapper
# ---------------------------------------------------------------------------
def bilinear_forward(x, M, gaussian, B, *, nonlocal_attenuation, use_bias,
                     weights_in_bf16=False):
    """x: [batch, nx, ny]; M, gaussian: out_features + in_features; B: out_features."""
    out_features = M.shape[: M.ndim - 2]
    nx, ny = M.shape[-2], M.shape[-1]
    batch = x.shape[0]
    K = nx * ny
    N = int(np.prod(out_features))

    # Merge static attenuation into the weight once (no extra weight stream in-kernel).
    if nonlocal_attenuation and len(out_features) == 2:
        Meff = M * gaussian
    else:
        Meff = M
    W = Meff.reshape(N, K)                    # [N, K]; contracted on trailing dim
    if weights_in_bf16:
        W = W.astype(jnp.bfloat16)            # optional: halves weight HBM traffic

    x_flat = x.reshape(batch, K)

    # Tile sizes: sublane-dense batch (>=8 rows), lane-dense N (>=128),
    # MXU-aligned multiples of 128, capped at 512 so tiles stay small vs VMEM.
    bm = min(128, _round_up(batch, 8))
    tn = min(512, _round_up(N, 128))
    tk = min(512, _round_up(K, 128))
    batch_p = _round_up(batch, bm)
    N_p = _round_up(N, tn)
    K_p = _round_up(K, tk)

    x_p = jnp.pad(x_flat, ((0, batch_p - batch), (0, K_p - K)))
    W_p = jnp.pad(W, ((0, N_p - N), (0, K_p - K)))

    grid = (batch_p // bm, N_p // tn, K_p // tk)

    in_specs = [
        pl.BlockSpec((bm, tk), lambda i, j, k: (i, k)),   # x tile
        pl.BlockSpec((tn, tk), lambda i, j, k: (j, k)),   # weight tile [N, K]
    ]
    operands = [x_p, W_p]
    if use_bias:
        b_p = jnp.pad(B.reshape(1, N).astype(x.dtype), ((0, 0), (0, N_p - N)))
        in_specs.append(pl.BlockSpec((1, tn), lambda i, j, k: (0, j)))
        operands.append(b_p)
        kernel = _bilinear_kernel_bias
    else:
        kernel = _bilinear_kernel_nobias

    out_p = pl.pallas_call(
        kernel,
        out_shape=jax.ShapeDtypeStruct((batch_p, N_p), x.dtype),
        grid_spec=pltpu.PrefetchScalarGridSpec(
            num_scalar_prefetch=0,
            grid=grid,
            in_specs=in_specs,
            out_specs=pl.BlockSpec((bm, tn), lambda i, j, k: (i, j)),
            scratch_shapes=[pltpu.VMEM((bm, tn), jnp.float32)],
        ),
        compiler_params=pltpu.CompilerParams(
            dimension_semantics=("parallel", "parallel", "arbitrary"),
            vmem_limit_bytes=48 * 1024 * 1024,
        ),
    )(*operands)

    out = out_p[:batch, :N]
    return out.reshape((batch,) + tuple(out_features))


# ---------------------------------------------------------------------------
# Deterministic parameter construction (mirrors Bilinear.__init__)
# ---------------------------------------------------------------------------
def make_params(key, in_features, out_features, bias=True, gaussian_std=1.0):
    nx, ny = in_features
    k = 1.0 / float(np.prod(in_features))
    bound = math.sqrt(k)

    k_m, k_b = jax.random.split(key)
    M = jax.random.uniform(
        k_m, tuple(out_features) + tuple(in_features),
        minval=-bound, maxval=bound, dtype=jnp.float32)
    if bias:
        B = jax.random.uniform(
            k_b, tuple(out_features), minval=-bound, maxval=bound, dtype=jnp.float32)
    else:
        B = jnp.zeros(tuple(out_features), dtype=jnp.float32)

    if len(out_features) == 2:
        mx, my = out_features
        m = min(mx, my)
        n = min(nx, ny)
        I = np.arange(mx)[:, None, None, None] / m
        J = np.arange(my)[None, :, None, None] / m
        i = np.arange(nx)[None, None, :, None] / n
        j = np.arange(ny)[None, None, None, :] / n
        dist = np.sqrt((I - i) ** 2 + (J - j) ** 2).astype(np.float32)
        gaussian = (1.0 / (gaussian_std * math.sqrt(2 * math.pi))
                    * np.exp(-dist ** 2 / (2 * gaussian_std ** 2))).astype(np.float32)
    else:
        dist = np.zeros(tuple(out_features) + tuple(in_features), dtype=np.float32)
        gaussian = np.zeros_like(dist)

    return M, B, jnp.asarray(dist), jnp.asarray(gaussian)


def _reference(x, M, gaussian, B, *, nonlocal_attenuation, use_bias):
    out_features = M.shape[: M.ndim - 2]
    Meff = M * gaussian if (nonlocal_attenuation and len(out_features) == 2) else M
    ref = jnp.tensordot(x, Meff, axes=([-2, -1], [-2, -1]))
    if use_bias:
        ref = ref + B
    return ref


if __name__ == "__main__":
    key = jax.random.PRNGKey(0)
    in_features = [16, 16]
    out_features = [8, 8]
    batch = 2

    k_x, k_p = jax.random.split(key)
    x = jax.random.normal(k_x, (batch, in_features[0], in_features[1]), dtype=jnp.float32)
    M, B, dist, gaussian = make_params(k_p, in_features, out_features, bias=True)

    # Case 1: bias + nonlocal attenuation (exercises the merged Meff path).
    out1 = jax.block_until_ready(
        bilinear_forward(x, M, gaussian, B, nonlocal_attenuation=True, use_bias=True))
    ref1 = _reference(x, M, gaussian, B, nonlocal_attenuation=True, use_bias=True)
    assert out1.shape == (batch, out_features[0], out_features[1])
    np.testing.assert_allclose(np.asarray(out1), np.asarray(ref1), rtol=1e-5, atol=1e-5)

    # Case 2: no bias, no attenuation (exercises the no-bias kernel variant).
    out2 = jax.block_until_ready(
        bilinear_forward(x, M, gaussian, B, nonlocal_attenuation=False, use_bias=False))
    ref2 = _reference(x, M, gaussian, B, nonlocal_attenuation=False, use_bias=False)
    np.testing.assert_allclose(np.asarray(out2), np.asarray(ref2), rtol=1e-5, atol=1e-5)

    print("KERNEL_OK")
</pallas_src>

<mosaic_0001>
module attributes {stable_mosaic.version = 11 : i64} {
  func.func @_bilinear_kernel_bias(%arg0: i32, %arg1: i32, %arg2: i32, %arg3: memref<8x256xf32, #tpu.memory_space<vmem>>, %arg4: memref<128x256xf32, #tpu.memory_space<vmem>>, %arg5: memref<1x128xf32, #tpu.memory_space<vmem>>, %arg6: memref<8x128xf32, #tpu.memory_space<vmem>>, %arg7: memref<8x128xf32, #tpu.memory_space<vmem>>) attributes {dimension_semantics = [#tpu.dimension_semantics<parallel>, #tpu.dimension_semantics<parallel>, #tpu.dimension_semantics<arbitrary>], iteration_bounds = array<i64: 1, 1, 1>, scalar_prefetch = 0 : i64, scratch_operands = 1 : i64, tpu.core_type = #tpu.core_type<tc>, window_params = [{transform_indices = @transform_0, window_bounds = array<i64: 8, 256>}, {transform_indices = @transform_1, window_bounds = array<i64: 128, 256>}, {transform_indices = @transform_2, window_bounds = array<i64: 1, 128>}, {transform_indices = @transform_3, window_bounds = array<i64: 8, 128>}]} {
    %c0_i32 = arith.constant 0 : i32
    %0 = arith.cmpi eq, %arg2, %c0_i32 : i32
    %1 = arith.extui %0 : i1 to i32
    %c0_i32_0 = arith.constant 0 : i32
    %2 = arith.cmpi ne, %1, %c0_i32_0 : i32
    scf.if %2 {
      %cst_10 = arith.constant 0.000000e+00 : f32
      %12 = vector.broadcast %cst_10 : f32 to vector<8x128xf32>
      %c0_11 = arith.constant 0 : index
      %c0_12 = arith.constant 0 : index
      %13 = vector.load %arg7[%c0_11, %c0_12] : memref<8x128xf32, #tpu.memory_space<vmem>>, vector<8x128xf32>
      tpu.vector_store %arg7[%c0_11, %c0_12], %12 {strides = array<i32>} : memref<8x128xf32, #tpu.memory_space<vmem>>, vector<8x128xf32>,
    } else {
    }
    %c0 = arith.constant 0 : index
    %c0_1 = arith.constant 0 : index
    %3 = vector.load %arg7[%c0, %c0_1] : memref<8x128xf32, #tpu.memory_space<vmem>>, vector<8x128xf32>
    %c0_2 = arith.constant 0 : index
    %c0_3 = arith.constant 0 : index
    %4 = vector.load %arg3[%c0_2, %c0_3] : memref<8x256xf32, #tpu.memory_space<vmem>>, vector<8x256xf32>
    %c0_4 = arith.constant 0 : index
    %c0_5 = arith.constant 0 : index
    %5 = vector.load %arg4[%c0_4, %c0_5] : memref<128x256xf32, #tpu.memory_space<vmem>>, vector<128x256xf32>
    %cst = arith.constant dense<0.000000e+00> : vector<8x128xf32>
    %6 = tpu.matmul %4, %5, %cst {dimension_numbers = #tpu.dot_dimension_numbers<[1], [1], [0], [0], [0, 0, 1, 0], [], []>} : vector<8x256xf32>, vector<128x256xf32>, vector<8x128xf32> -> vector<8x128xf32>
    %7 = arith.addf %3, %6 : vector<8x128xf32>
    %c0_6 = arith.constant 0 : index
    %c0_7 = arith.constant 0 : index
    %8 = vector.load %arg7[%c0_6, %c0_7] : memref<8x128xf32, #tpu.memory_space<vmem>>, vector<8x128xf32>
    tpu.vector_store %arg7[%c0_6, %c0_7], %7 {strides = array<i32>} : memref<8x128xf32, #tpu.memory_space<vmem>>, vector<8x128xf32>,
    %c0_i32_8 = arith.constant 0 : i32
    %9 = arith.cmpi eq, %arg2, %c0_i32_8 : i32
    %10 = arith.extui %9 : i1 to i32
    %c0_i32_9 = arith.constant 0 : i32
    %11 = arith.cmpi ne, %10, %c0_i32_9 : i32
    scf.if %11 {
      %c0_10 = arith.constant 0 : index
      %c0_11 = arith.constant 0 : index
      %12 = vector.load %arg7[%c0_10, %c0_11] : memref<8x128xf32, #tpu.memory_space<vmem>>, vector<8x128xf32>
      %c0_12 = arith.constant 0 : index
      %c0_13 = arith.constant 0 : index
      %13 = vector.load %arg5[%c0_12, %c0_13] : memref<1x128xf32, #tpu.memory_space<vmem>>, vector<1x128xf32>
      %14 = vector.broadcast %13 : vector<1x128xf32> to vector<8x128xf32>
      %15 = arith.addf %12, %14 : vector<8x128xf32>
      %c0_14 = arith.constant 0 : index
      %c0_15 = arith.constant 0 : index
      %16 = vector.load %arg6[%c0_14, %c0_15] : memref<8x128xf32, #tpu.memory_space<vmem>>, vector<8x128xf32>
      tpu.vector_store %arg6[%c0_14, %c0_15], %15 {strides = array<i32>} : memref<8x128xf32, #tpu.memory_space<vmem>>, vector<8x128xf32>,
    } else {
    }
    return
  }
  func.func @transform_0(%arg0: i32, %arg1: i32, %arg2: i32) -> (i32, i32) {
    %c0_i32 = arith.constant 0 : i32
    return %arg0, %arg2 : i32, i32
  }
  func.func @transform_1(%arg0: i32, %arg1: i32, %arg2: i32) -> (i32, i32) {
    %c0_i32 = arith.constant 0 : i32
    return %arg1, %arg2 : i32, i32
  }
  func.func @transform_2(%arg0: i32, %arg1: i32, %arg2: i32) -> (i32, i32) {
    %c0_i32 = arith.constant 0 : i32
    %c0_i32_0 = arith.constant 0 : i32
    return %c0_i32, %arg1 : i32, i32
  }
  func.func @transform_3(%arg0: i32, %arg1: i32, %arg2: i32) -> (i32, i32) {
    %c0_i32 = arith.constant 0 : i32
    return %arg0, %arg1 : i32, i32
  }
}

</mosaic_0001>

<llo_original>
// kernel: tpu_custom_call.1
$region0: #{tpu_custom_call.1}
  #allocation0 [shape = 'u32[]', space=smem, size = 0x4, offset = 0x4, fixed_abs, tag = 'smem constant byte address 0x4 - core index']
  #allocation1 [shape = 'u32[72,128]{1,0:T(1,128)}', space=vmem, size = 0x9000, scoped, tag = 'internal scratch']
  #allocation2 [shape = 'f32[8,128]{1,0:T(8,128)}', space=vmem, size = 0x1000, scoped, tag = 'scratch operand']
  %s0 = inlined_call_operand.hbm [shape: f32[8,256], index: 0, kind: input, shape index: {}]
  %s1 = inlined_call_operand.hbm [shape: f32[128,256], index: 1, kind: input, shape index: {}]
  %s2 = inlined_call_operand.vmem [shape: f32[1,128], index: 2, kind: input, shape index: {}]
  %s3 = inlined_call_operand.hbm [shape: f32[8,128], index: 3, kind: output, shape index: {}]
  %s4 = sld [smem:[#allocation0]]
  $region38: #{tpu_custom_call.1} parent=0
    _
  %s6 = ssub.s32 1, %s4
  %s7 = scalar_select 0, %s6, %s4
  $region1: #{tpu_custom_call.1} parent=0
    #allocation3 [shape = 'u8[8192]{0}', space=vmem, size = 0x2000, scoped, tag = 'input window, operand 0, single buffered']
    #allocation4 [shape = 's32[1]{0}', space=sflag, size = 0x4, scoped, tag = 'scoped memory for tpu_custom_call.1']
    #allocation5 [shape = 's32[1]{0}', space=sflag, size = 0x4, scoped, tag = 'scoped memory for tpu_custom_call.1']
    #allocation6 [shape = 'u8[131072]{0}', space=vmem, size = 0x20000, scoped, tag = 'input window, operand 1, single buffered']
    #allocation7 [shape = 's32[1]{0}', space=sflag, size = 0x4, scoped, tag = 'scoped memory for tpu_custom_call.1']
    #allocation8 [shape = 'u8[4096]{0}', space=vmem, size = 0x1000, scoped, tag = 'output window, operand 0, single buffered']
    %8 = vsyncpa [#allocation4], 0
    %9 = vsyncpa [#allocation7], 0
    %10 = vsyncpa [#allocation5], 0
    // Predicated region
    $region2: #{tpu_custom_call.1} parent=1 // pred_check
      _
    $region3: #{tpu_custom_call.1} parent=1 // pred_check_branch
      %12 = sbr.rel (0) target = $region5
    $region4: #{tpu_custom_call.1} parent=1 // pred_region
      %14 = vsyncadd [#allocation4], 0
      %s16 = sshll.u32 %s0, 4
      %s17 = int_to_ptr.hbm [resolvable:$true] %s16
      %s18 = sshll.u32 [#allocation3], 4
      %s19 = int_to_ptr.vmem [resolvable:$true] %s18
      %21 = dma.hbm_to_vmem [thread:$0]  %s17, 256, %s19, [#allocation4]
    $region5: #{tpu_custom_call.1} parent=1 // pred_fallthru
      _
    // Predicated region
    $region6: #{tpu_custom_call.1} parent=1 // pred_check
      _
    $region7: #{tpu_custom_call.1} parent=1 // pred_check_branch
      %23 = sbr.rel (0) target = $region9
    $region8: #{tpu_custom_call.1} parent=1 // pred_region
      %25 = vsyncadd [#allocation7], 0
      %s26 = sshll.u32 %s1, 4
      %s27 = int_to_ptr.hbm [resolvable:$true] %s26
      %s28 = sshll.u32 [#allocation6], 4
      %s29 = int_to_ptr.vmem [resolvable:$true] %s28
      %34 = dma.hbm_to_vmem [thread:$0]  %s27, 4096, %s29, [#allocation7], 256, 256, 16
    $region9: #{tpu_custom_call.1} parent=1 // pred_fallthru
      _
    // Predicated region
    $region10: #{tpu_custom_call.1} parent=1 // pred_check
      _
    $region11: #{tpu_custom_call.1} parent=1 // pred_check_branch
      %36 = sbr.rel (0) target = $region13
    $region12: #{tpu_custom_call.1} parent=1 // pred_region
      _
    $region13: #{tpu_custom_call.1} parent=1 // pred_fallthru
      _
    // Predicated region
    $region14: #{tpu_custom_call.1} parent=1 // pred_check
      _
    $region15: #{tpu_custom_call.1} parent=1 // pred_check_branch
      %38 = sbr.rel (0) target = $region17
    $region16: #{tpu_custom_call.1} parent=1 // pred_region
      %40 = dma.done [#allocation4], 256
    $region17: #{tpu_custom_call.1} parent=1 // pred_fallthru
      _
    // Predicated region
    $region18: #{tpu_custom_call.1} parent=1 // pred_check
      _
    $region19: #{tpu_custom_call.1} parent=1 // pred_check_branch
      %42 = sbr.rel (0) target = $region21
    $region20: #{tpu_custom_call.1} parent=1 // pred_region
      %44 = dma.done [#allocation7], 4096
    $region21: #{tpu_custom_call.1} parent=1 // pred_fallthru
      _
    %p45 = scmp.eq.s32.totalorder 0, 0
    // Predicated region
    $region22: #{tpu_custom_call.1} parent=1 // pred_check
      %p46 = pneg %p45
    $region23: #{tpu_custom_call.1} parent=1 // pred_check_branch
      %48 = sbr.rel (%p46) target = $region25
    $region24: #{tpu_custom_call.1} parent=1 // pred_region
      %49 = vst [vmem:[#allocation2] sm:$0xff] 0.0
    $region25: #{tpu_custom_call.1} parent=1 // pred_fallthru
      _
    %v50 = vld [vmem:[#allocation2] sm:$0xff]
    %v51 = vld [vmem:[#allocation3] sm:$0xff]
    %v52 = vld [vmem:[#allocation3 + $0x8] sm:$0xff]
    %v53 = vld [vmem:[#allocation6] sm:$0xff]
    %v54 = vld [vmem:[#allocation6 + $0x8] sm:$0xff]
    %v55 = vld [vmem:[#allocation6 + $0x10] sm:$0xff]
    %v56 = vld [vmem:[#allocation6 + $0x18] sm:$0xff]
    %v57 = vld [vmem:[#allocation6 + $0x20] sm:$0xff]
    %v58 = vld [vmem:[#allocation6 + $0x28] sm:$0xff]
    %v59 = vld [vmem:[#allocation6 + $0x30] sm:$0xff]
    %v60 = vld [vmem:[#allocation6 + $0x38] sm:$0xff]
    %v61 = vld [vmem:[#allocation6 + $0x40] sm:$0xff]
    %v62 = vld [vmem:[#allocation6 + $0x48] sm:$0xff]
    %v63 = vld [vmem:[#allocation6 + $0x50] sm:$0xff]
    %v64 = vld [vmem:[#allocation6 + $0x58] sm:$0xff]
    %v65 = vld [vmem:[#allocation6 + $0x60] sm:$0xff]
    %v66 = vld [vmem:[#allocation6 + $0x68] sm:$0xff]
    %v67 = vld [vmem:[#allocation6 + $0x70] sm:$0xff]
    %v68 = vld [vmem:[#allocation6 + $0x78] sm:$0xff]
    %v69 = vld [vmem:[#allocation6 + $0x80] sm:$0xff]
    %v70 = vld [vmem:[#allocation6 + $0x88] sm:$0xff]
    %v71 = vld [vmem:[#allocation6 + $0x90] sm:$0xff]
    %v72 = vld [vmem:[#allocation6 + $0x98] sm:$0xff]
    %v73 = vld [vmem:[#allocation6 + $0xa0] sm:$0xff]
    %v74 = vld [vmem:[#allocation6 + $0xa8] sm:$0xff]
    %v75 = vld [vmem:[#allocation6 + $0xb0] sm:$0xff]
    %v76 = vld [vmem:[#allocation6 + $0xb8] sm:$0xff]
    %v77 = vld [vmem:[#allocation6 + $0xc0] sm:$0xff]
    %v78 = vld [vmem:[#allocation6 + $0xc8] sm:$0xff]
    %v79 = vld [vmem:[#allocation6 + $0xd0] sm:$0xff]
    %v80 = vld [vmem:[#allocation6 + $0xd8] sm:$0xff]
    %v81 = vld [vmem:[#allocation6 + $0xe0] sm:$0xff]
    %v82 = vld [vmem:[#allocation6 + $0xe8] sm:$0xff]
    %v83 = vld [vmem:[#allocation6 + $0xf0] sm:$0xff]
    %v84 = vld [vmem:[#allocation6 + $0xf8] sm:$0xff]
    %85 = vmatpush.xpose.msra.mxu0 %v83
    %86 = vmatpush.xpose.msra.mxu0 %v81
    %87 = vmatpush.xpose.msra.mxu0 %v79
    %88 = vmatpush.xpose.msra.mxu0 %v77
    %89 = vmatpush.xpose.msra.mxu0 %v75
    %90 = vmatpush.xpose.msra.mxu0 %v73
    %91 = vmatpush.xpose.msra.mxu0 %v71
    %92 = vmatpush.xpose.msra.mxu0 %v69
    %93 = vmatpush.xpose.msra.mxu0 %v67
    %94 = vmatpush.xpose.msra.mxu0 %v65
    %95 = vmatpush.xpose.msra.mxu0 %v63
    %96 = vmatpush.xpose.msra.mxu0 %v61
    %97 = vmatpush.xpose.msra.mxu0 %v59
    %98 = vmatpush.xpose.msra.mxu0 %v57
    %99 = vmatpush.xpose.msra.mxu0 %v55
    %100 = vmatpush.xpose.msra.mxu0 %v53
    %101 = vmatmul.f32.gmra.mxu0 %v51
    %v102 = vpop.f32.mrf.mxu0
    %v103 = vadd.f32 0.0, %v102
    %104 = vdwg.mxu0
    %105 = vmatpush.xpose.msra.mxu0 %v84
    %106 = vmatpush.xpose.msra.mxu0 %v82
    %107 = vmatpush.xpose.msra.mxu0 %v80
    %108 = vmatpush.xpose.msra.mxu0 %v78
    %109 = vmatpush.xpose.msra.mxu0 %v76
    %110 = vmatpush.xpose.msra.mxu0 %v74
    %111 = vmatpush.xpose.msra.mxu0 %v72
    %112 = vmatpush.xpose.msra.mxu0 %v70
    %113 = vmatpush.xpose.msra.mxu0 %v68
    %114 = vmatpush.xpose.msra.mxu0 %v66
    %115 = vmatpush.xpose.msra.mxu0 %v64
    %116 = vmatpush.xpose.msra.mxu0 %v62
    %117 = vmatpush.xpose.msra.mxu0 %v60
    %118 = vmatpush.xpose.msra.mxu0 %v58
    %119 = vmatpush.xpose.msra.mxu0 %v56
    %120 = vmatpush.xpose.msra.mxu0 %v54
    %121 = vmatmul.f32.gmra.mxu0 %v52
    %v122 = vpop.f32.mrf.mxu0
    %v123 = vadd.f32 %v103, %v122
    %124 = vdwg.mxu0
    %v125 = vadd.f32 %v50, %v123
    %126 = vst [vmem:[#allocation2] sm:$0xff] %v125
    // Predicated region
    $region26: #{tpu_custom_call.1} parent=1 // pred_check
      %p127 = pneg %p45
    $region27: #{tpu_custom_call.1} parent=1 // pred_check_branch
      %129 = sbr.rel (%p127) target = $region29
    $region28: #{tpu_custom_call.1} parent=1 // pred_region
      %v130 = vld [vmem:[#allocation2] sm:$0xff]
      %v131 = vld [vmem:[%s2] sm:$0x1]
      %v133 = vperm.slane %v131, 0
      %v135 = vadd.f32 %v130, %v133
      %136 = vst [vmem:[#allocation8] sm:$0xff] %v135
    $region29: #{tpu_custom_call.1} parent=1 // pred_fallthru
      _
    // Predicated region
    $region30: #{tpu_custom_call.1} parent=1 // pred_check
      _
    $region31: #{tpu_custom_call.1} parent=1 // pred_check_branch
      %138 = sbr.rel (0) target = $region33
    $region32: #{tpu_custom_call.1} parent=1 // pred_region
      %140 = vsyncadd [#allocation5], 0
      %s142 = sshll.u32 [#allocation8], 4
      %s143 = int_to_ptr.vmem [resolvable:$true] %s142
      %s144 = sshll.u32 %s3, 4
      %s145 = int_to_ptr.hbm [resolvable:$true] %s144
      %147 = dma.vmem_to_hbm [thread:$0]  %s143, 128, %s145, [#allocation5]
    $region33: #{tpu_custom_call.1} parent=1 // pred_fallthru
      _
    // Predicated region
    $region34: #{tpu_custom_call.1} parent=1 // pred_check
      _
    $region35: #{tpu_custom_call.1} parent=1 // pred_check_branch
      %149 = sbr.rel (0) target = $region37
    $region36: #{tpu_custom_call.1} parent=1 // pred_region
      %151 = dma.done [#allocation5], 128
    $region37: #{tpu_custom_call.1} parent=1 // pred_fallthru
      _
    %152 = vsyncpa [#allocation4], 1
    %153 = vsyncpa [#allocation7], 1
    %154 = vsyncpa [#allocation5], 1

</llo_original>
